<compile_context>
chip_gen: v7x
topology: tpu7x:2x2x1
jax: 0.10.0
libtpu: 0.0.40
codegen_flags: <defaults>
</compile_context>

<pallas_src>
import functools
import math

import jax
import jax.numpy as jnp
from jax.experimental import pallas as pl
from jax.experimental.pallas import tpu as pltpu

_LANE = 128
_EPS = 1e-7
_MAX_BLOCK_ROWS = 4096     # 4096*128*4B = 2 MiB per f32 input block
_MIN_GRID_STEPS = 4        # keep the pipeline busy / feed both v7x TCs


def _round_up(x, m):
    return ((x + m - 1) // m) * m


def _bce_elementwise_f32(x, t):
    # Exact eps-clamped formula from the PyTorch module, computed in f32.
    #   -(t*log_a + (1-t)*log_b) == -(log_b + t*(log_a - log_b))
    # (one fewer multiply, no (1-t) materialization).
    # TODO(synk): for hard {0,1} targets a single log on a selected prob would
    # drop one EUP op/element, but it changes soft-target semantics; not used.
    p = jax.nn.sigmoid(x)
    log_a = jnp.log(p + _EPS)
    log_b = jnp.log(1.0 - p + _EPS)
    return -(log_b + t * (log_a - log_b))


# -------------------- reduction kernel: per-block partial sums ---------------
def _partial_sum_kernel(logits_ref, targets_ref, out_ref, *,
                        block_rows, last_block_valid, needs_mask):
    x = logits_ref[...].astype(jnp.float32)
    t = targets_ref[...].astype(jnp.float32)
    loss = _bce_elementwise_f32(x, t)

    if needs_mask:
        last = pl.num_programs(0) - 1

        @pl.when(pl.program_id(0) == last)
        def _():
            # Only the final block is ragged (128-padding and/or block overrun).
            # Index math is block-local (< block_rows*128), so no i32 overflow.
            row = jax.lax.broadcasted_iota(jnp.int32, (block_rows, _LANE), 0)
            lane = jax.lax.broadcasted_iota(jnp.int32, (block_rows, _LANE), 1)
            valid = (row * _LANE + lane) < last_block_valid
            # Select (not multiply) so NaN/Inf from stale VMEM is truly zeroed.
            out_ref[...] = jnp.sum(jnp.where(valid, loss, 0.0),
                                   axis=0).reshape(1, 1, _LANE)

        @pl.when(pl.program_id(0) != last)
        def _():
            out_ref[...] = jnp.sum(loss, axis=0).reshape(1, 1, _LANE)
    else:
        out_ref[...] = jnp.sum(loss, axis=0).reshape(1, 1, _LANE)


# -------------------- elementwise kernel ('none' reduction) ------------------
def _elementwise_kernel(logits_ref, targets_ref, out_ref):
    x = logits_ref[...].astype(jnp.float32)
    t = targets_ref[...].astype(jnp.float32)
    out_ref[...] = _bce_elementwise_f32(x, t).astype(out_ref.dtype)


# ------------------------------ wrapper ---------------------------------------
def _as_lane_slab(a, n_total, rows):
    """Flatten to a lane-dense (rows, 128) slab; zero-pad only when ragged."""
    flat = a.reshape(-1)
    padded = rows * _LANE
    if padded != n_total:
        # TODO(synk): rare path (n_total % 128 != 0) costs one extra HBM copy.
        flat = jnp.pad(flat, (0, padded - n_total))
    return flat.reshape(rows, _LANE)


def _pick_block_rows(rows, max_block_rows):
    if rows <= 8:
        return rows                      # tiny: single full-extent block
    target = pl.cdiv(rows, _MIN_GRID_STEPS)
    return min(max_block_rows, _round_up(target, 8))


def _vmem_limit_bytes(block_rows, in_itemsizes, out_itemsize=0):
    blk = block_rows * _LANE
    need = sum(2 * blk * s for s in in_itemsizes)    # double-buffered inputs
    need += 2 * blk * out_itemsize                   # double-buffered output
    return int(min(max(need + (8 << 20), 16 << 20), 48 << 20))


def bce_with_logits_loss(logits, targets, reduction="mean", *,
                         max_block_rows=_MAX_BLOCK_ROWS):
    """Pallas-TPU BCE-with-logits loss matching CustomBCEWithLogitsLoss.forward."""
    assert logits.shape == targets.shape
    orig_shape = logits.shape
    n_total = math.prod(orig_shape) if orig_shape else 1

    out_dtype = jnp.promote_types(logits.dtype, targets.dtype)
    if not jnp.issubdtype(out_dtype, jnp.floating):
        out_dtype = jnp.float32

    rows = pl.cdiv(n_total, _LANE)
    block_rows = _pick_block_rows(rows, max_block_rows)
    grid = (pl.cdiv(rows, block_rows),)
    padded_total = grid[0] * block_rows * _LANE
    needs_mask = padded_total != n_total
    last_block_valid = n_total - (grid[0] - 1) * block_rows * _LANE

    x2 = _as_lane_slab(logits, n_total, rows)
    t2 = _as_lane_slab(targets, n_total, rows)

    in_specs = [
        pl.BlockSpec((block_rows, _LANE), lambda i: (i, 0)),
        pl.BlockSpec((block_rows, _LANE), lambda i: (i, 0)),
    ]
    in_itemsizes = (jnp.dtype(logits.dtype).itemsize,
                    jnp.dtype(targets.dtype).itemsize)
    # TODO(synk): pltpu.CORE_PARALLEL and pipeline_mode=pl.Buffered(3) are worth
    # a sweep on v7x but are kept off here for maximum compile portability.

    if reduction == "none":
        cparams = pltpu.CompilerParams(
            dimension_semantics=("parallel",),
            vmem_limit_bytes=_vmem_limit_bytes(
                block_rows, in_itemsizes, jnp.dtype(out_dtype).itemsize))
        out = pl.pallas_call(
            _elementwise_kernel,
            out_shape=jax.ShapeDtypeStruct((rows, _LANE), out_dtype),
            grid_spec=pltpu.PrefetchScalarGridSpec(
                num_scalar_prefetch=0,
                grid=grid,
                in_specs=in_specs,
                out_specs=pl.BlockSpec((block_rows, _LANE), lambda i: (i, 0)),
            ),
            compiler_params=cparams,
        )(x2, t2)
        return out.reshape(-1)[:n_total].reshape(orig_shape)

    # 'mean' / 'sum': per-block partial sums, parallel grid, tiny JAX epilogue.
    cparams = pltpu.CompilerParams(
        dimension_semantics=("parallel",),
        vmem_limit_bytes=_vmem_limit_bytes(block_rows, in_itemsizes))
    partials = pl.pallas_call(
        functools.partial(_partial_sum_kernel,
                          block_rows=block_rows,
                          last_block_valid=last_block_valid,
                          needs_mask=needs_mask),
        out_shape=jax.ShapeDtypeStruct((grid[0], 1, _LANE), jnp.float32),
        grid_spec=pltpu.PrefetchScalarGridSpec(
            num_scalar_prefetch=0,
            grid=grid,
            in_specs=in_specs,
            out_specs=pl.BlockSpec((1, 1, _LANE), lambda i: (i, 0, 0)),
        ),
        compiler_params=cparams,
    )(x2, t2)

    total = jnp.sum(partials, dtype=jnp.float32)
    if reduction == "mean":
        total = total / jnp.float32(n_total)
    return total.astype(out_dtype)


# ------------------------------- reference -----------------------------------
def _reference(logits, targets, reduction="mean"):
    p = jax.nn.sigmoid(logits.astype(jnp.float32))
    t = targets.astype(jnp.float32)
    loss = -(t * jnp.log(p + _EPS) + (1.0 - t) * jnp.log(1.0 - p + _EPS))
    if reduction == "mean":
        return loss.mean()
    if reduction == "sum":
        return loss.sum()
    return loss


if __name__ == "__main__":
    key = jax.random.PRNGKey(0)
    k1, k2, k3, k4 = jax.random.split(key, 4)

    # Primary small NCHW case (128-aligned: no mask path compiled at all).
    shape = (2, 4, 16, 16)
    logits = jax.random.normal(k1, shape, dtype=jnp.float32) * 2.0
    targets = (jax.random.uniform(k2, shape) > 0.5).astype(jnp.float32)

    out_mean = bce_with_logits_loss(logits, targets, "mean")
    out_sum = bce_with_logits_loss(logits, targets, "sum")
    out_none = bce_with_logits_loss(logits, targets, "none")
    jax.block_until_ready((out_mean, out_sum, out_none))

    assert jnp.allclose(out_mean, _reference(logits, targets, "mean"),
                        rtol=1e-5, atol=1e-5)
    assert jnp.allclose(out_sum, _reference(logits, targets, "sum"),
                        rtol=1e-4, atol=1e-3)
    assert out_none.shape == shape
    assert jnp.allclose(out_none, _reference(logits, targets, "none"),
                        rtol=1e-5, atol=1e-5)

    # Ragged case: n_total % 128 != 0 (pad + masked final block, grid=1).
    shape2 = (3, 5, 7)  # 105 elements
    l2 = jax.random.normal(k3, shape2, dtype=jnp.float32) * 3.0
    t2 = jax.random.uniform(k4, shape2)
    m2 = bce_with_logits_loss(l2, t2, "mean")
    n2 = bce_with_logits_loss(l2, t2, "none")
    jax.block_until_ready((m2, n2))
    assert jnp.allclose(m2, _reference(l2, t2, "mean"), rtol=1e-5, atol=1e-5)
    assert jnp.allclose(n2, _reference(l2, t2, "none"), rtol=1e-5, atol=1e-5)

    # Multi-block with ragged/overrun final block (mask only on last step).
    shape3 = (17, 130)  # 2210 elements -> rows=18, block_rows=8 -> grid=3
    l3 = jax.random.normal(k1, shape3, dtype=jnp.float32)
    t3 = (jax.random.uniform(k2, shape3) > 0.5).astype(jnp.float32)
    m3 = bce_with_logits_loss(l3, t3, "mean", max_block_rows=8)
    n3 = bce_with_logits_loss(l3, t3, "none", max_block_rows=8)
    jax.block_until_ready((m3, n3))
    assert jnp.allclose(m3, _reference(l3, t3, "mean"), rtol=1e-5, atol=1e-5)
    assert jnp.allclose(n3, _reference(l3, t3, "none"), rtol=1e-5, atol=1e-5)

    # Aligned multi-block: 262144 elems -> 2048 rows -> block 512, grid 4
    # (exercises the min-grid-steps / mask-free fast path).
    shape4 = (64, 4, 32, 32)
    l4 = jax.random.normal(k3, shape4, dtype=jnp.float32)
    t4 = jax.random.uniform(k4, shape4)
    m4 = bce_with_logits_loss(l4, t4, "mean")
    jax.block_until_ready(m4)
    assert jnp.allclose(m4, _reference(l4, t4, "mean"), rtol=1e-5, atol=1e-5)

    print("KERNEL_OK")
</pallas_src>

<mosaic_0001>
module attributes {stable_mosaic.version = 11 : i64} {
  func.func @_partial_sum_kernel(%arg0: i32, %arg1: memref<8x128xf32, #tpu.memory_space<vmem>>, %arg2: memref<8x128xf32, #tpu.memory_space<vmem>>, %arg3: memref<1x1x128xf32, #tpu.memory_space<vmem>>) attributes {dimension_semantics = [#tpu.dimension_semantics<parallel>], iteration_bounds = array<i64: 2>, scalar_prefetch = 0 : i64, scratch_operands = 0 : i64, tpu.core_type = #tpu.core_type<tc>, window_params = [{transform_indices = @transform_0, window_bounds = array<i64: 8, 128>}, {transform_indices = @transform_1, window_bounds = array<i64: 8, 128>}, {transform_indices = @transform_2, window_bounds = array<i64: 1, 1, 128>}]} {
    %c0 = arith.constant 0 : index
    %c0_0 = arith.constant 0 : index
    %0 = vector.load %arg1[%c0, %c0_0] : memref<8x128xf32, #tpu.memory_space<vmem>>, vector<8x128xf32>
    %c0_1 = arith.constant 0 : index
    %c0_2 = arith.constant 0 : index
    %1 = vector.load %arg2[%c0_1, %c0_2] : memref<8x128xf32, #tpu.memory_space<vmem>>, vector<8x128xf32>
    %2 = arith.negf %0 : vector<8x128xf32>
    %3 = math.exp %2 : vector<8x128xf32>
    %cst = arith.constant 1.000000e+00 : f32
    %4 = vector.broadcast %cst : f32 to vector<8x128xf32>
    %5 = arith.addf %4, %3 : vector<8x128xf32>
    %6 = arith.divf %4, %5 : vector<8x128xf32>
    %cst_3 = arith.constant 1.000000e-07 : f32
    %7 = vector.broadcast %cst_3 : f32 to vector<8x128xf32>
    %8 = arith.addf %6, %7 : vector<8x128xf32>
    %9 = math.log %8 : vector<8x128xf32>
    %cst_4 = arith.constant 1.000000e+00 : f32
    %10 = vector.broadcast %cst_4 : f32 to vector<8x128xf32>
    %11 = arith.subf %10, %6 : vector<8x128xf32>
    %cst_5 = arith.constant 1.000000e-07 : f32
    %12 = vector.broadcast %cst_5 : f32 to vector<8x128xf32>
    %13 = arith.addf %11, %12 : vector<8x128xf32>
    %14 = math.log %13 : vector<8x128xf32>
    %15 = arith.subf %9, %14 : vector<8x128xf32>
    %16 = arith.mulf %1, %15 : vector<8x128xf32>
    %17 = arith.addf %14, %16 : vector<8x128xf32>
    %cst_6 = arith.constant 0.000000e+00 : f32
    %18 = vector.broadcast %cst_6 : f32 to vector<8x128xf32>
    %19 = arith.subf %18, %17 : vector<8x128xf32>
    %cst_7 = arith.constant dense<0.000000e+00> : vector<128xf32>
    %20 = vector.multi_reduction <add>, %19, %cst_7 [0] : vector<8x128xf32> to vector<128xf32>
    %21 = vector.shape_cast %20 : vector<128xf32> to vector<1x1x128xf32>
    %c0_8 = arith.constant 0 : index
    %c0_9 = arith.constant 0 : index
    %c0_10 = arith.constant 0 : index
    %22 = vector.load %arg3[%c0_8, %c0_9, %c0_10] : memref<1x1x128xf32, #tpu.memory_space<vmem>>, vector<1x1x128xf32>
    tpu.vector_store %arg3[%c0_8, %c0_9, %c0_10], %21 {strides = array<i32>} : memref<1x1x128xf32, #tpu.memory_space<vmem>>, vector<1x1x128xf32>,
    return
  }
  func.func @transform_0(%arg0: i32) -> (i32, i32) {
    %c0_i32 = arith.constant 0 : i32
    %c0_i32_0 = arith.constant 0 : i32
    return %arg0, %c0_i32 : i32, i32
  }
  func.func @transform_1(%arg0: i32) -> (i32, i32) {
    %c0_i32 = arith.constant 0 : i32
    %c0_i32_0 = arith.constant 0 : i32
    return %arg0, %c0_i32 : i32, i32
  }
  func.func @transform_2(%arg0: i32) -> (i32, i32, i32) {
    %c0_i32 = arith.constant 0 : i32
    %c0_i32_0 = arith.constant 0 : i32
    %c0_i32_1 = arith.constant 0 : i32
    return %arg0, %c0_i32, %c0_i32_0 : i32, i32, i32
  }
}

</mosaic_0001>

<llo_original>
// kernel: tpu_custom_call.1
$region0: #{tpu_custom_call.1}
  #allocation0 [shape = 'u32[]', space=smem, size = 0x4, offset = 0x4, fixed_abs, tag = 'smem constant byte address 0x4 - core index']
  #allocation1 [shape = 'u32[144,128]{1,0:T(1,128)}', space=vmem, size = 0x12000, scoped, tag = 'internal scratch']
  %s0 = inlined_call_operand.hbm [shape: f32[16,128], index: 0, kind: input, shape index: {}]
  %s1 = inlined_call_operand.hbm [shape: f32[16,128], index: 1, kind: input, shape index: {}]
  %s2 = inlined_call_operand.hbm [shape: f32[2,1,128], index: 2, kind: output, shape index: {}]
  %s3 = sld [smem:[#allocation0]]
  $region49: #{tpu_custom_call.1} parent=0
    _
  %s5 = ssub.s32 1, %s3
  %s6 = scalar_select 0, %s5, %s3
  $region1: #{tpu_custom_call.1} parent=0
    #allocation2 [shape = 'u8[8192]{0}', space=vmem, size = 0x2000, scoped, tag = 'input window, operand 0']
    #allocation3 [shape = 's32[2]{0}', space=sflag, size = 0x8, scoped, tag = 'scoped memory for tpu_custom_call.1']
    #allocation4 [shape = 's32[2]{0}', space=sflag, size = 0x8, scoped, tag = 'scoped memory for tpu_custom_call.1']
    #allocation5 [shape = 'u8[8192]{0}', space=vmem, size = 0x2000, scoped, tag = 'input window, operand 1']
    #allocation6 [shape = 's32[2]{0}', space=sflag, size = 0x8, scoped, tag = 'scoped memory for tpu_custom_call.1']
    #allocation7 [shape = 'u8[1024]{0}', space=vmem, size = 0x400, scoped, tag = 'output window, operand 0']
    %7 = vsyncpa [#allocation3], 0
    %s8 = scalar_lea.sflag [#allocation3], 1
    %9 = vsyncpa %s8, 0
    %10 = vsyncpa [#allocation6], 0
    %s11 = scalar_lea.sflag [#allocation6], 1
    %12 = vsyncpa %s11, 0
    %13 = vsyncpa [#allocation4], 0
    %s14 = scalar_lea.sflag [#allocation4], 1
    %15 = vsyncpa %s14, 0
    loop: start=0, step=1, limit=4
    $region2: #{tpu_custom_call.1} parent=1 // loop_pre_header
      _
    $region3: #{tpu_custom_call.1} parent=1 // loop_header
      %s17 = sphi 0, %s21
      %p18 = scmp.ge.s32.totalorder %s17, 4
      %s27 = sphi 0, %s29
      %s30 = sphi 0, %s27
      %s31 = sphi 0, %s30
      %s47 = sphi 0, %s31
      %s53 = sphi 0, %s55
      %s56 = sphi 0, %s53
      %s57 = sphi 0, %s56
      %s73 = sphi 0, %s57
      %s79 = sphi 0, %s81
      %s82 = sphi 0, %s79
      %s83 = sphi 0, %s82
      %s99 = sphi 0, %s83
    $region4: #{tpu_custom_call.1} parent=1 // loop_header_branch
      %20 = sbr.rel (%p18) target = $region8
    $region5: #{tpu_custom_call.1} parent=1 // loop_body
      %s22 = ssub.s32 %s17, 1
      %s23 = ssub.s32 %s17, 2
      %s24 = sadd.s32 %s17, 1
      %s25 = ssub.s32 %s17, %s24
      %p26 = scmp.eq.s32.totalorder %s25, 0
      %s28 = sadd.s32 %s27, 1
      %s29 = scalar_select %p26, %s27, %s28
      %p32 = pneg %p26
      %p33 = scmp.eq.s32.totalorder %s17, 1
      %p34 = por %p32, %p33
      %p35 = scmp.ne.s32.totalorder %s27, %s30
      %p36 = scmp.eq.s32.totalorder %s17, 0
      %p37 = por %p35, %p36
      %p38 = scmp.ne.s32.totalorder %s27, %s30
      %p39 = scmp.eq.s32.totalorder %s22, 1
      %p40 = por %p38, %p39
      %p41 = scmp.ne.s32.totalorder %s30, %s31
      %p42 = scmp.eq.s32.totalorder %s22, 0
      %p43 = por %p41, %p42
      %p44 = scmp.ne.s32.totalorder %s30, %s31
      %p45 = scmp.eq.s32.totalorder %s23, 1
      %p46 = por %p44, %p45
      %p48 = scmp.ne.s32.totalorder %s31, %s47
      %p49 = scmp.eq.s32.totalorder %s23, 0
      %p50 = por %p48, %p49
      %s51 = ssub.s32 %s17, %s24
      %p52 = scmp.eq.s32.totalorder %s51, 0
      %s54 = sadd.s32 %s53, 1
      %s55 = scalar_select %p52, %s53, %s54
      %p58 = pneg %p52
      %p59 = scmp.eq.s32.totalorder %s17, 1
      %p60 = por %p58, %p59
      %p61 = scmp.ne.s32.totalorder %s53, %s56
      %p62 = scmp.eq.s32.totalorder %s17, 0
      %p63 = por %p61, %p62
      %p64 = scmp.ne.s32.totalorder %s53, %s56
      %p65 = scmp.eq.s32.totalorder %s22, 1
      %p66 = por %p64, %p65
      %p67 = scmp.ne.s32.totalorder %s56, %s57
      %p68 = scmp.eq.s32.totalorder %s22, 0
      %p69 = por %p67, %p68
      %p70 = scmp.ne.s32.totalorder %s56, %s57
      %p71 = scmp.eq.s32.totalorder %s23, 1
      %p72 = por %p70, %p71
      %p74 = scmp.ne.s32.totalorder %s57, %s73
      %p75 = scmp.eq.s32.totalorder %s23, 0
      %p76 = por %p74, %p75
      %s77 = ssub.s32 %s17, %s24
      %p78 = scmp.eq.s32.totalorder %s77, 0
      %s80 = sadd.s32 %s79, 1
      %s81 = scalar_select %p78, %s79, %s80
      %p84 = pneg %p78
      %p85 = scmp.eq.s32.totalorder %s17, 1
      %p86 = por %p84, %p85
      %p87 = scmp.ne.s32.totalorder %s79, %s82
      %p88 = scmp.eq.s32.totalorder %s17, 0
      %p89 = por %p87, %p88
      %p90 = scmp.ne.s32.totalorder %s79, %s82
      %p91 = scmp.eq.s32.totalorder %s22, 1
      %p92 = por %p90, %p91
      %p93 = scmp.ne.s32.totalorder %s82, %s83
      %p94 = scmp.eq.s32.totalorder %s22, 0
      %p95 = por %p93, %p94
      %p96 = scmp.ne.s32.totalorder %s82, %s83
      %p97 = scmp.eq.s32.totalorder %s23, 1
      %p98 = por %p96, %p97
      %p100 = scmp.ne.s32.totalorder %s83, %s99
      %p101 = scmp.eq.s32.totalorder %s23, 0
      %p102 = por %p100, %p101
      %p103 = scmp.le.s32.totalorder 1, %s17
      %p104 = scmp.lt.s32.totalorder %s17, 3
      %p105 = pnand %p103, %p104
      %p106 = pneg %p105
      // Predicated region
      $region9: #{tpu_custom_call.1} parent=5 // pred_check
        _
      $region10: #{tpu_custom_call.1} parent=5 // pred_check_branch
        %108 = sbr.rel (%p105) target = $region12
      $region11: #{tpu_custom_call.1} parent=5 // pred_region
        %s109 = ssub.s32 %s17, 1
      $region12: #{tpu_custom_call.1} parent=5 // pred_fallthru
        _
      %p110 = scmp.lt.s32.totalorder %s17, 2
      // Predicated region
      $region13: #{tpu_custom_call.1} parent=5 // pred_check
        %p111 = pneg %p110
      $region14: #{tpu_custom_call.1} parent=5 // pred_check_branch
        %113 = sbr.rel (%p111) target = $region16
      $region15: #{tpu_custom_call.1} parent=5 // pred_region
        // Predicated region
        $region17: #{tpu_custom_call.1} parent=15 // pred_check
          %p114 = pneg %p37
        $region18: #{tpu_custom_call.1} parent=15 // pred_check_branch
          %116 = sbr.rel (%p114) target = $region20
        $region19: #{tpu_custom_call.1} parent=15 // pred_region
          %s117 = sand.u32 %s27, 1
          %s118 = scalar_lea.sflag [#allocation3], %s117
          %s119 = sand.u32 %s27, 1
          %s120 = smul.addr %s119, 8
          %s121 = scalar_lea.vmem [#allocation2], %s120
          %s123 = ssub.s32 128, 128
          %124 = vsyncadd %s118, %s123
          %s125 = smul.addr %s17, 128
          %s126 = scalar_lea.hbm %s0, %s125
          %s128 = sshll.u32 %s121, 4
          %s129 = int_to_ptr.vmem [resolvable:$true] %s128
          %131 = dma.hbm_to_vmem [thread:$0]  %s126, 128, %s129, %s118
        $region20: #{tpu_custom_call.1} parent=15 // pred_fallthru
          _
        // Predicated region
        $region21: #{tpu_custom_call.1} parent=15 // pred_check
          %p132 = pneg %p63
        $region22: #{tpu_custom_call.1} parent=15 // pred_check_branch
          %134 = sbr.rel (%p132) target = $region24
        $region23: #{tpu_custom_call.1} parent=15 // pred_region
          %s135 = sand.u32 %s53, 1
          %s136 = scalar_lea.sflag [#allocation6], %s135
          %s137 = sand.u32 %s53, 1
          %s138 = smul.addr %s137, 8
          %s139 = scalar_lea.vmem [#allocation5], %s138
          %s141 = ssub.s32 128, 128
          %142 = vsyncadd %s136, %s141
          %s143 = smul.addr %s17, 128
          %s144 = scalar_lea.hbm %s1, %s143
          %s146 = sshll.u32 %s139, 4
          %s147 = int_to_ptr.vmem [resolvable:$true] %s146
          %149 = dma.hbm_to_vmem [thread:$0]  %s144, 128, %s147, %s136
        $region24: #{tpu_custom_call.1} parent=15 // pred_fallthru
          _
      $region16: #{tpu_custom_call.1} parent=5 // pred_fallthru
        _
      %p150 = scmp.le.s32.totalorder 1, %s17
      %p151 = scmp.lt.s32.totalorder %s17, 3
      %p152 = pnand %p150, %p151
      %p153 = pneg %p152
      // Predicated region
      $region25: #{tpu_custom_call.1} parent=5 // pred_check
        _
      $region26: #{tpu_custom_call.1} parent=5 // pred_check_branch
        %155 = sbr.rel (%p152) target = $region28
      $region27: #{tpu_custom_call.1} parent=5 // pred_region
        %s156 = ssub.s32 %s17, 1
        %s157 = sand.u32 %s30, 1
        %s158 = scalar_lea.sflag [#allocation3], %s157
        %s159 = sand.u32 %s30, 1
        %s160 = smul.addr %s159, 8
        %s161 = scalar_lea.vmem [#allocation2], %s160
        // Predicated region
        $region29: #{tpu_custom_call.1} parent=27 // pred_check
          %p162 = pneg %p43
        $region30: #{tpu_custom_call.1} parent=27 // pred_check_branch
          %164 = sbr.rel (%p162) target = $region32
        $region31: #{tpu_custom_call.1} parent=27 // pred_region
          %165 = dma.done %s158, 128
        $region32: #{tpu_custom_call.1} parent=27 // pred_fallthru
          _
        %s166 = sand.u32 %s56, 1
        %s167 = scalar_lea.sflag [#allocation6], %s166
        %s168 = sand.u32 %s56, 1
        %s169 = smul.addr %s168, 8
        %s170 = scalar_lea.vmem [#allocation5], %s169
        // Predicated region
        $region33: #{tpu_custom_call.1} parent=27 // pred_check
          %p171 = pneg %p69
        $region34: #{tpu_custom_call.1} parent=27 // pred_check_branch
          %173 = sbr.rel (%p171) target = $region36
        $region35: #{tpu_custom_call.1} parent=27 // pred_region
          %174 = dma.done %s167, 128
        $region36: #{tpu_custom_call.1} parent=27 // pred_fallthru
          _
        %s175 = sand.u32 %s30, 1
        %s176 = scalar_lea.sflag [#allocation3], %s175
        %s177 = sand.u32 %s30, 1
        %s178 = smul.addr %s177, 8
        %s179 = scalar_lea.vmem [#allocation2], %s178
        %p180 = pneg %p43
        %p181 = pneg %p40
        %s182 = sand.u32 %s56, 1
        %s183 = scalar_lea.sflag [#allocation6], %s182
        %s184 = sand.u32 %s56, 1
        %s185 = smul.addr %s184, 8
        %s186 = scalar_lea.vmem [#allocation5], %s185
        %p187 = pneg %p69
        %p188 = pneg %p66
        %p189 = pneg %p95
        %p190 = pneg %p92
        %s191 = sand.u32 %s82, 1
        %s192 = scalar_lea.sflag [#allocation4], %s191
        %s193 = sand.u32 %s82, 1
        %s194 = scalar_lea.vmem [#allocation7], %s193
        %v195 = vld [vmem:[%s161] sm:$0xff]
        %v196 = vld [vmem:[%s170] sm:$0xff]
        %v197 = vxor.u32 %v195, 2147483648
        %v198 = vmul.f32 %v197, 1.442695
        %v199 = vpow.pop %v198
        %v200 = vadd.f32 %v199, 1.0
        %v201 = vrcp.pop %v200
        %v202 = vmul.f32 1.0, %v201
        %v203 = vadd.f32 %v202, 1e-07
        %v204 = vlog2.pop %v203
        %v205 = vmul.f32 %v204, 0.6931472
        %v206 = vsub.f32 1.0, %v202
        %v207 = vadd.f32 %v206, 1e-07
        %v208 = vlog2.pop %v207
        %v209 = vmul.f32 %v208, 0.6931472
        %v210 = vsub.f32 %v205, %v209
        %v211 = vmul.f32 %v196, %v210
        %v212 = vadd.f32 %v209, %v211
        %v213 = vsub.f32 0.0, %v212
        %v214 = vrot.slane %v213, 4
        %v215 = vadd.f32 %v213, %v214
        %v216 = vrot.slane %v215, 2
        %v217 = vadd.f32 %v215, %v216
        %v218 = vrot.slane %v217, 1
        %v219 = vadd.f32 %v217, %v218
        %220 = vst [vmem:[%s194] sm:$0x1] %v219
        %s221 = sand.u32 %s82, 1
        %s222 = scalar_lea.sflag [#allocation4], %s221
        %s223 = sand.u32 %s82, 1
        %s224 = scalar_lea.vmem [#allocation7], %s223
        // Predicated region
        $region37: #{tpu_custom_call.1} parent=27 // pred_check
          %p225 = pneg %p92
        $region38: #{tpu_custom_call.1} parent=27 // pred_check_branch
          %227 = sbr.rel (%p225) target = $region40
        $region39: #{tpu_custom_call.1} parent=27 // pred_region
          %s229 = ssub.s32 16, 16
          %230 = vsyncadd %s222, %s229
          %s231 = smul.addr %s22, 16
          %s232 = scalar_lea.hbm %s2, %s231
          %s234 = sshll.u32 %s224, 4
          %s235 = int_to_ptr.vmem [resolvable:$true] %s234
          %237 = dma.vmem_to_hbm [thread:$0]  %s235, 16, %s232, %s222
        $region40: #{tpu_custom_call.1} parent=27 // pred_fallthru
          _
      $region28: #{tpu_custom_call.1} parent=5 // pred_fallthru
        _
      %p238 = scmp.le.s32.totalorder 2, %s17
      // Predicated region
      $region41: #{tpu_custom_call.1} parent=5 // pred_check
        %p239 = pneg %p238
      $region42: #{tpu_custom_call.1} parent=5 // pred_check_branch
        %241 = sbr.rel (%p239) target = $region44
      $region43: #{tpu_custom_call.1} parent=5 // pred_region
        %s242 = ssub.s32 %s17, 2
        // Predicated region
        $region45: #{tpu_custom_call.1} parent=43 // pred_check
          %p243 = pneg %p98
        $region46: #{tpu_custom_call.1} parent=43 // pred_check_branch
          %245 = sbr.rel (%p243) target = $region48
        $region47: #{tpu_custom_call.1} parent=43 // pred_region
          %s246 = sand.u32 %s83, 1
          %s247 = scalar_lea.sflag [#allocation4], %s246
          %s248 = sand.u32 %s83, 1
          %s249 = scalar_lea.vmem [#allocation7], %s248
          %250 = dma.done %s247, 16
        $region48: #{tpu_custom_call.1} parent=43 // pred_fallthru
          _
      $region44: #{tpu_custom_call.1} parent=5 // pred_fallthru
        _
    $region6: #{tpu_custom_call.1} parent=1 // loop_footer
      %s21 = sadd.s32 1, %s17
    $region7: #{tpu_custom_call.1} parent=1 // loop_footer_branch
      %16 = sbr.rel target = $region3
    $region8: #{tpu_custom_call.1} parent=1 // loop_exit
      _
    %251 = vsyncpa [#allocation3], 1
    %s252 = scalar_lea.sflag [#allocation3], 1
    %253 = vsyncpa %s252, 1
    %254 = vsyncpa [#allocation6], 1
    %s255 = scalar_lea.sflag [#allocation6], 1
    %256 = vsyncpa %s255, 1
    %257 = vsyncpa [#allocation4], 1
    %s258 = scalar_lea.sflag [#allocation4], 1
    %259 = vsyncpa %s258, 1

</llo_original>
